<compile_context>
chip_gen: v7x
topology: tpu7x:2x2x1
jax: 0.10.0
libtpu: 0.0.40
codegen_flags: <defaults>
</compile_context>

<pallas_src>
import functools

import jax
import jax.numpy as jnp
from jax.experimental import pallas as pl
from jax.experimental.pallas import tpu as pltpu


def _round_up(v, m):
    return (v + m - 1) // m * m


# ---------------------------------------------------------------------------
# In-kernel helpers
# ---------------------------------------------------------------------------
def _make_taps(hh, ww, H, W, ks):
    """Per-tap (lane roll amount, boundary mask) for 'same' padding.

    hh, ww: (1, H*W) int32 row/col index of each flattened spatial position.
    """
    pad = (ks - 1) // 2
    HW = H * W
    taps = []
    for kh in range(ks):
        dh = kh - pad
        for kw in range(ks):
            dw = kw - pad
            shift = (-(dh * W + dw)) % HW     # roll so lane p sees (h+dh, w+dw)
            if dh == 0 and dw == 0:
                taps.append((shift, None))    # center tap: no shift, no mask
            else:
                valid = ((hh + dh >= 0) & (hh + dh < H) &
                         (ww + dw >= 0) & (ww + dw < W))
                taps.append((shift, valid.astype(jnp.float32)))
    return taps


def _im2col(x, taps):
    """x: (C_pad, H*W)  ->  (ks*ks*C_pad, H*W) with zero padding semantics.

    Each slab is a lane-roll (XLU) of x with out-of-bounds positions zeroed;
    C_pad is a multiple of 8, so the sublane concatenation is tile-aligned.
    """
    slabs = []
    for shift, mask in taps:
        shifted = pltpu.roll(x, shift=shift, axis=1) if shift else x
        slabs.append(shifted if mask is None else shifted * mask)
    return jnp.concatenate(slabs, axis=0)


# ---------------------------------------------------------------------------
# Fused ResBlock kernel: one grid step == one image
# ---------------------------------------------------------------------------
def resblock_kernel(x_ref, hh_ref, ww_ref, w1_ref, b1_ref, w2_ref, b2_ref,
                    o_ref, *, H, W, ks):
    c_out = o_ref.shape[0]                       # true (unpadded) Cin
    taps = _make_taps(hh_ref[...], ww_ref[...], H, W, ks)

    x = x_ref[...]                               # (Cin_pad, H*W) f32

    # conv1 + bias + ReLU  (single fat matmul, K = ks*ks*Cin_pad)
    xcol = _im2col(x, taps)                      # (ks*ks*Cin_pad, H*W)
    mid = jnp.dot(w1_ref[...], xcol, preferred_element_type=jnp.float32)
    mid = jnp.maximum(mid + b1_ref[...], 0.0)    # (Cmid_pad, H*W), stays in VMEM

    # conv2 + bias + residual + ReLU  (single fat matmul, K = ks*ks*Cmid_pad)
    mcol = _im2col(mid, taps)                    # (ks*ks*Cmid_pad, H*W)
    out = jnp.dot(w2_ref[...], mcol, preferred_element_type=jnp.float32)
    out = jnp.maximum(out + b2_ref[...] + x[:c_out, :], 0.0)
    o_ref[...] = out                             # lane-dense (Cin, H*W) store


# ---------------------------------------------------------------------------
# Host-side weight packing (one-time):  OIHW -> (Cout[, padded], ks*ks*Cin_pad)
# ---------------------------------------------------------------------------
def _pack_conv(w_oihw, b, cin_pad, cout_pad=None):
    cout, cin, ks, _ = w_oihw.shape
    w = jnp.transpose(w_oihw, (2, 3, 1, 0))                     # (kh, kw, ci, co)
    w = jnp.pad(w, ((0, 0), (0, 0), (0, cin_pad - cin), (0, 0)))
    w = w.reshape(ks * ks * cin_pad, cout).T                    # (co, K)
    b = b.reshape(cout, 1)
    if cout_pad is not None and cout_pad != cout:               # pad M with zeros
        w = jnp.pad(w, ((0, cout_pad - cout), (0, 0)))
        b = jnp.pad(b, ((0, cout_pad - cout), (0, 0)))
    return w.astype(jnp.float32), b.astype(jnp.float32)


def pack_resblock_params(w1_oihw, b1, w2_oihw, b2):
    cmid, cin, ks, _ = w1_oihw.shape
    cin_pad = _round_up(cin, 8)
    cmid_pad = _round_up(cmid, 8)
    # conv1: pad both K (input channels) and M (mid channels); padded mid rows
    # come out exactly 0 after ReLU, and conv2 has zero columns for them.
    w1, b1p = _pack_conv(w1_oihw, b1, cin_pad, cmid_pad)   # (Cmid_pad, 9*Cin_pad)
    w2, b2p = _pack_conv(w2_oihw, b2, cmid_pad, None)      # (Cin,      9*Cmid_pad)
    return w1, b1p, w2, b2p


# ---------------------------------------------------------------------------
# Wrapper
# ---------------------------------------------------------------------------
def resblock_forward(x_nchw, params, ks=3):
    """Fused Pallas ResBlock. x_nchw: (N, Cin, H, W) float32 (PyTorch layout)."""
    w1, b1, w2, b2 = params
    N, Cin, H, W = x_nchw.shape
    HW = H * W
    cin_pad = w1.shape[1] // (ks * ks)

    # NCHW -> (N, Cin, H*W) is a metadata-only reshape (contiguous), no copy.
    x = x_nchw.reshape(N, Cin, HW).astype(jnp.float32)
    if cin_pad != Cin:
        # tiny channel pad so in-kernel sublane ops stay tile-aligned
        x = jnp.pad(x, ((0, 0), (0, cin_pad - Cin), (0, 0)))

    # Precompute flattened-position (row, col) indices for the boundary masks
    # (avoids in-kernel integer div/mod).
    pos = jnp.arange(HW, dtype=jnp.int32)
    hh = (pos // W).reshape(1, HW)
    ww = (pos % W).reshape(1, HW)

    kernel = functools.partial(resblock_kernel, H=H, W=W, ks=ks)
    out = pl.pallas_call(
        kernel,
        out_shape=jax.ShapeDtypeStruct((N, Cin, HW), jnp.float32),
        grid=(N,),
        in_specs=[
            pl.BlockSpec((None, cin_pad, HW), lambda n: (n, 0, 0)),  # x (squeezed N)
            pl.BlockSpec((1, HW), lambda n: (0, 0)),                 # hh
            pl.BlockSpec((1, HW), lambda n: (0, 0)),                 # ww
            pl.BlockSpec(w1.shape, lambda n: (0, 0)),                # w1 packed
            pl.BlockSpec(b1.shape, lambda n: (0, 0)),                # b1
            pl.BlockSpec(w2.shape, lambda n: (0, 0)),                # w2 packed
            pl.BlockSpec(b2.shape, lambda n: (0, 0)),                # b2
        ],
        out_specs=pl.BlockSpec((None, Cin, HW), lambda n: (n, 0, 0)),
        compiler_params=pltpu.CompilerParams(
            dimension_semantics=("parallel",)),
    )(x, hh, ww, w1, b1, w2, b2)

    return out.reshape(N, Cin, H, W)


# ---------------------------------------------------------------------------
# Pure-JAX reference (NCHW, PyTorch semantics)
# ---------------------------------------------------------------------------
def ref_resblock(x, w1_oihw, b1, w2_oihw, b2):
    def conv(x, w, b):
        y = jax.lax.conv_general_dilated(
            x, w, window_strides=(1, 1), padding=[(1, 1), (1, 1)],
            dimension_numbers=("NCHW", "OIHW", "NCHW"))
        return y + b.reshape(1, -1, 1, 1)

    out = jnp.maximum(conv(x, w1_oihw, b1), 0.0)
    out = conv(out, w2_oihw, b2) + x
    return jnp.maximum(out, 0.0)


# ---------------------------------------------------------------------------
if __name__ == "__main__":
    N, Cin, H, W = 2, 4, 16, 16
    Cmid = 8
    ks = 3

    key = jax.random.PRNGKey(0)
    kx, kw1, kb1, kw2, kb2 = jax.random.split(key, 5)

    x = jax.random.normal(kx, (N, Cin, H, W), jnp.float32)

    # PyTorch conv parameter shapes: weight (out, in, kh, kw), bias (out,)
    w1_oihw = jax.random.normal(kw1, (Cmid, Cin, ks, ks), jnp.float32) * 0.1
    b1_vec = jax.random.normal(kb1, (Cmid,), jnp.float32) * 0.1
    w2_oihw = jax.random.normal(kw2, (Cin, Cmid, ks, ks), jnp.float32) * 0.1
    b2_vec = jax.random.normal(kb2, (Cin,), jnp.float32) * 0.1

    params = pack_resblock_params(w1_oihw, b1_vec, w2_oihw, b2_vec)

    out = resblock_forward(x, params, ks=ks)
    out = jax.block_until_ready(out)

    ref = ref_resblock(x, w1_oihw, b1_vec, w2_oihw, b2_vec)
    if not jnp.allclose(out, ref, atol=1e-4, rtol=1e-4):
        raise AssertionError("Pallas ResBlock output mismatch vs reference")

    print("KERNEL_OK")
</pallas_src>

<mosaic_0001>
module attributes {stable_mosaic.version = 11 : i64} {
  func.func @resblock_kernel(%arg0: i32, %arg1: memref<1x8x256xf32, #tpu.memory_space<vmem>>, %arg2: memref<1x256xi32, #tpu.memory_space<vmem>>, %arg3: memref<1x256xi32, #tpu.memory_space<vmem>>, %arg4: memref<8x72xf32, #tpu.memory_space<vmem>>, %arg5: memref<8x1xf32, #tpu.memory_space<vmem>>, %arg6: memref<4x72xf32, #tpu.memory_space<vmem>>, %arg7: memref<4x1xf32, #tpu.memory_space<vmem>>, %arg8: memref<1x4x256xf32, #tpu.memory_space<vmem>>) attributes {dimension_semantics = [#tpu.dimension_semantics<parallel>], iteration_bounds = array<i64: 2>, scalar_prefetch = 0 : i64, scratch_operands = 0 : i64, tpu.core_type = #tpu.core_type<tc>, window_params = [{transform_indices = @transform_0, window_bounds = array<i64: 1, 8, 256>}, {pipeline_mode = #tpu.pipeline_mode<synchronous>, transform_indices = @transform_1, window_bounds = array<i64: 1, 256>}, {pipeline_mode = #tpu.pipeline_mode<synchronous>, transform_indices = @transform_2, window_bounds = array<i64: 1, 256>}, {pipeline_mode = #tpu.pipeline_mode<synchronous>, transform_indices = @transform_3, window_bounds = array<i64: 8, 72>}, {pipeline_mode = #tpu.pipeline_mode<synchronous>, transform_indices = @transform_4, window_bounds = array<i64: 8, 1>}, {pipeline_mode = #tpu.pipeline_mode<synchronous>, transform_indices = @transform_5, window_bounds = array<i64: 4, 72>}, {pipeline_mode = #tpu.pipeline_mode<synchronous>, transform_indices = @transform_6, window_bounds = array<i64: 4, 1>}, {transform_indices = @transform_7, window_bounds = array<i64: 1, 4, 256>}]} {
    %c0 = arith.constant 0 : index
    %c0_0 = arith.constant 0 : index
    %0 = vector.load %arg2[%c0, %c0_0] : memref<1x256xi32, #tpu.memory_space<vmem>>, vector<1x256xi32>
    %c0_1 = arith.constant 0 : index
    %c0_2 = arith.constant 0 : index
    %1 = vector.load %arg3[%c0_1, %c0_2] : memref<1x256xi32, #tpu.memory_space<vmem>>, vector<1x256xi32>
    %c-1_i32 = arith.constant -1 : i32
    %2 = vector.broadcast %c-1_i32 : i32 to vector<1x256xi32>
    %3 = arith.addi %0, %2 : vector<1x256xi32>
    %c0_i32 = arith.constant 0 : i32
    %4 = vector.broadcast %c0_i32 : i32 to vector<1x256xi32>
    %5 = arith.cmpi sge, %3, %4 : vector<1x256xi32>
    %c-1_i32_3 = arith.constant -1 : i32
    %6 = vector.broadcast %c-1_i32_3 : i32 to vector<1x256xi32>
    %7 = arith.addi %0, %6 : vector<1x256xi32>
    %c16_i32 = arith.constant 16 : i32
    %8 = vector.broadcast %c16_i32 : i32 to vector<1x256xi32>
    %9 = arith.cmpi slt, %7, %8 : vector<1x256xi32>
    %10 = arith.andi %5, %9 : vector<1x256xi1>
    %c-1_i32_4 = arith.constant -1 : i32
    %11 = vector.broadcast %c-1_i32_4 : i32 to vector<1x256xi32>
    %12 = arith.addi %1, %11 : vector<1x256xi32>
    %c0_i32_5 = arith.constant 0 : i32
    %13 = vector.broadcast %c0_i32_5 : i32 to vector<1x256xi32>
    %14 = arith.cmpi sge, %12, %13 : vector<1x256xi32>
    %15 = arith.andi %10, %14 : vector<1x256xi1>
    %c-1_i32_6 = arith.constant -1 : i32
    %16 = vector.broadcast %c-1_i32_6 : i32 to vector<1x256xi32>
    %17 = arith.addi %1, %16 : vector<1x256xi32>
    %c16_i32_7 = arith.constant 16 : i32
    %18 = vector.broadcast %c16_i32_7 : i32 to vector<1x256xi32>
    %19 = arith.cmpi slt, %17, %18 : vector<1x256xi32>
    %20 = arith.andi %15, %19 : vector<1x256xi1>
    %21 = arith.extui %20 : vector<1x256xi1> to vector<1x256xi32>
    %22 = arith.sitofp %21 : vector<1x256xi32> to vector<1x256xf32>
    %c-1_i32_8 = arith.constant -1 : i32
    %23 = vector.broadcast %c-1_i32_8 : i32 to vector<1x256xi32>
    %24 = arith.addi %0, %23 : vector<1x256xi32>
    %c0_i32_9 = arith.constant 0 : i32
    %25 = vector.broadcast %c0_i32_9 : i32 to vector<1x256xi32>
    %26 = arith.cmpi sge, %24, %25 : vector<1x256xi32>
    %c-1_i32_10 = arith.constant -1 : i32
    %27 = vector.broadcast %c-1_i32_10 : i32 to vector<1x256xi32>
    %28 = arith.addi %0, %27 : vector<1x256xi32>
    %c16_i32_11 = arith.constant 16 : i32
    %29 = vector.broadcast %c16_i32_11 : i32 to vector<1x256xi32>
    %30 = arith.cmpi slt, %28, %29 : vector<1x256xi32>
    %31 = arith.andi %26, %30 : vector<1x256xi1>
    %c0_i32_12 = arith.constant 0 : i32
    %32 = vector.broadcast %c0_i32_12 : i32 to vector<1x256xi32>
    %33 = arith.addi %1, %32 : vector<1x256xi32>
    %c0_i32_13 = arith.constant 0 : i32
    %34 = vector.broadcast %c0_i32_13 : i32 to vector<1x256xi32>
    %35 = arith.cmpi sge, %33, %34 : vector<1x256xi32>
    %36 = arith.andi %31, %35 : vector<1x256xi1>
    %c0_i32_14 = arith.constant 0 : i32
    %37 = vector.broadcast %c0_i32_14 : i32 to vector<1x256xi32>
    %38 = arith.addi %1, %37 : vector<1x256xi32>
    %c16_i32_15 = arith.constant 16 : i32
    %39 = vector.broadcast %c16_i32_15 : i32 to vector<1x256xi32>
    %40 = arith.cmpi slt, %38, %39 : vector<1x256xi32>
    %41 = arith.andi %36, %40 : vector<1x256xi1>
    %42 = arith.extui %41 : vector<1x256xi1> to vector<1x256xi32>
    %43 = arith.sitofp %42 : vector<1x256xi32> to vector<1x256xf32>
    %c-1_i32_16 = arith.constant -1 : i32
    %44 = vector.broadcast %c-1_i32_16 : i32 to vector<1x256xi32>
    %45 = arith.addi %0, %44 : vector<1x256xi32>
    %c0_i32_17 = arith.constant 0 : i32
    %46 = vector.broadcast %c0_i32_17 : i32 to vector<1x256xi32>
    %47 = arith.cmpi sge, %45, %46 : vector<1x256xi32>
    %c-1_i32_18 = arith.constant -1 : i32
    %48 = vector.broadcast %c-1_i32_18 : i32 to vector<1x256xi32>
    %49 = arith.addi %0, %48 : vector<1x256xi32>
    %c16_i32_19 = arith.constant 16 : i32
    %50 = vector.broadcast %c16_i32_19 : i32 to vector<1x256xi32>
    %51 = arith.cmpi slt, %49, %50 : vector<1x256xi32>
    %52 = arith.andi %47, %51 : vector<1x256xi1>
    %c1_i32 = arith.constant 1 : i32
    %53 = vector.broadcast %c1_i32 : i32 to vector<1x256xi32>
    %54 = arith.addi %1, %53 : vector<1x256xi32>
    %c0_i32_20 = arith.constant 0 : i32
    %55 = vector.broadcast %c0_i32_20 : i32 to vector<1x256xi32>
    %56 = arith.cmpi sge, %54, %55 : vector<1x256xi32>
    %57 = arith.andi %52, %56 : vector<1x256xi1>
    %c1_i32_21 = arith.constant 1 : i32
    %58 = vector.broadcast %c1_i32_21 : i32 to vector<1x256xi32>
    %59 = arith.addi %1, %58 : vector<1x256xi32>
    %c16_i32_22 = arith.constant 16 : i32
    %60 = vector.broadcast %c16_i32_22 : i32 to vector<1x256xi32>
    %61 = arith.cmpi slt, %59, %60 : vector<1x256xi32>
    %62 = arith.andi %57, %61 : vector<1x256xi1>
    %63 = arith.extui %62 : vector<1x256xi1> to vector<1x256xi32>
    %64 = arith.sitofp %63 : vector<1x256xi32> to vector<1x256xf32>
    %c0_i32_23 = arith.constant 0 : i32
    %65 = vector.broadcast %c0_i32_23 : i32 to vector<1x256xi32>
    %66 = arith.addi %0, %65 : vector<1x256xi32>
    %c0_i32_24 = arith.constant 0 : i32
    %67 = vector.broadcast %c0_i32_24 : i32 to vector<1x256xi32>
    %68 = arith.cmpi sge, %66, %67 : vector<1x256xi32>
    %c0_i32_25 = arith.constant 0 : i32
    %69 = vector.broadcast %c0_i32_25 : i32 to vector<1x256xi32>
    %70 = arith.addi %0, %69 : vector<1x256xi32>
    %c16_i32_26 = arith.constant 16 : i32
    %71 = vector.broadcast %c16_i32_26 : i32 to vector<1x256xi32>
    %72 = arith.cmpi slt, %70, %71 : vector<1x256xi32>
    %73 = arith.andi %68, %72 : vector<1x256xi1>
    %c-1_i32_27 = arith.constant -1 : i32
    %74 = vector.broadcast %c-1_i32_27 : i32 to vector<1x256xi32>
    %75 = arith.addi %1, %74 : vector<1x256xi32>
    %c0_i32_28 = arith.constant 0 : i32
    %76 = vector.broadcast %c0_i32_28 : i32 to vector<1x256xi32>
    %77 = arith.cmpi sge, %75, %76 : vector<1x256xi32>
    %78 = arith.andi %73, %77 : vector<1x256xi1>
    %c-1_i32_29 = arith.constant -1 : i32
    %79 = vector.broadcast %c-1_i32_29 : i32 to vector<1x256xi32>
    %80 = arith.addi %1, %79 : vector<1x256xi32>
    %c16_i32_30 = arith.constant 16 : i32
    %81 = vector.broadcast %c16_i32_30 : i32 to vector<1x256xi32>
    %82 = arith.cmpi slt, %80, %81 : vector<1x256xi32>
    %83 = arith.andi %78, %82 : vector<1x256xi1>
    %84 = arith.extui %83 : vector<1x256xi1> to vector<1x256xi32>
    %85 = arith.sitofp %84 : vector<1x256xi32> to vector<1x256xf32>
    %c0_i32_31 = arith.constant 0 : i32
    %86 = vector.broadcast %c0_i32_31 : i32 to vector<1x256xi32>
    %87 = arith.addi %0, %86 : vector<1x256xi32>
    %c0_i32_32 = arith.constant 0 : i32
    %88 = vector.broadcast %c0_i32_32 : i32 to vector<1x256xi32>
    %89 = arith.cmpi sge, %87, %88 : vector<1x256xi32>
    %c0_i32_33 = arith.constant 0 : i32
    %90 = vector.broadcast %c0_i32_33 : i32 to vector<1x256xi32>
    %91 = arith.addi %0, %90 : vector<1x256xi32>
    %c16_i32_34 = arith.constant 16 : i32
    %92 = vector.broadcast %c16_i32_34 : i32 to vector<1x256xi32>
    %93 = arith.cmpi slt, %91, %92 : vector<1x256xi32>
    %94 = arith.andi %89, %93 : vector<1x256xi1>
    %c1_i32_35 = arith.constant 1 : i32
    %95 = vector.broadcast %c1_i32_35 : i32 to vector<1x256xi32>
    %96 = arith.addi %1, %95 : vector<1x256xi32>
    %c0_i32_36 = arith.constant 0 : i32
    %97 = vector.broadcast %c0_i32_36 : i32 to vector<1x256xi32>
    %98 = arith.cmpi sge, %96, %97 : vector<1x256xi32>
    %99 = arith.andi %94, %98 : vector<1x256xi1>
    %c1_i32_37 = arith.constant 1 : i32
    %100 = vector.broadcast %c1_i32_37 : i32 to vector<1x256xi32>
    %101 = arith.addi %1, %100 : vector<1x256xi32>
    %c16_i32_38 = arith.constant 16 : i32
    %102 = vector.broadcast %c16_i32_38 : i32 to vector<1x256xi32>
    %103 = arith.cmpi slt, %101, %102 : vector<1x256xi32>
    %104 = arith.andi %99, %103 : vector<1x256xi1>
    %105 = arith.extui %104 : vector<1x256xi1> to vector<1x256xi32>
    %106 = arith.sitofp %105 : vector<1x256xi32> to vector<1x256xf32>
    %c1_i32_39 = arith.constant 1 : i32
    %107 = vector.broadcast %c1_i32_39 : i32 to vector<1x256xi32>
    %108 = arith.addi %0, %107 : vector<1x256xi32>
    %c0_i32_40 = arith.constant 0 : i32
    %109 = vector.broadcast %c0_i32_40 : i32 to vector<1x256xi32>
    %110 = arith.cmpi sge, %108, %109 : vector<1x256xi32>
    %c1_i32_41 = arith.constant 1 : i32
    %111 = vector.broadcast %c1_i32_41 : i32 to vector<1x256xi32>
    %112 = arith.addi %0, %111 : vector<1x256xi32>
    %c16_i32_42 = arith.constant 16 : i32
    %113 = vector.broadcast %c16_i32_42 : i32 to vector<1x256xi32>
    %114 = arith.cmpi slt, %112, %113 : vector<1x256xi32>
    %115 = arith.andi %110, %114 : vector<1x256xi1>
    %c-1_i32_43 = arith.constant -1 : i32
    %116 = vector.broadcast %c-1_i32_43 : i32 to vector<1x256xi32>
    %117 = arith.addi %1, %116 : vector<1x256xi32>
    %c0_i32_44 = arith.constant 0 : i32
    %118 = vector.broadcast %c0_i32_44 : i32 to vector<1x256xi32>
    %119 = arith.cmpi sge, %117, %118 : vector<1x256xi32>
    %120 = arith.andi %115, %119 : vector<1x256xi1>
    %c-1_i32_45 = arith.constant -1 : i32
    %121 = vector.broadcast %c-1_i32_45 : i32 to vector<1x256xi32>
    %122 = arith.addi %1, %121 : vector<1x256xi32>
    %c16_i32_46 = arith.constant 16 : i32
    %123 = vector.broadcast %c16_i32_46 : i32 to vector<1x256xi32>
    %124 = arith.cmpi slt, %122, %123 : vector<1x256xi32>
    %125 = arith.andi %120, %124 : vector<1x256xi1>
    %126 = arith.extui %125 : vector<1x256xi1> to vector<1x256xi32>
    %127 = arith.sitofp %126 : vector<1x256xi32> to vector<1x256xf32>
    %c1_i32_47 = arith.constant 1 : i32
    %128 = vector.broadcast %c1_i32_47 : i32 to vector<1x256xi32>
    %129 = arith.addi %0, %128 : vector<1x256xi32>
    %c0_i32_48 = arith.constant 0 : i32
    %130 = vector.broadcast %c0_i32_48 : i32 to vector<1x256xi32>
    %131 = arith.cmpi sge, %129, %130 : vector<1x256xi32>
    %c1_i32_49 = arith.constant 1 : i32
    %132 = vector.broadcast %c1_i32_49 : i32 to vector<1x256xi32>
    %133 = arith.addi %0, %132 : vector<1x256xi32>
    %c16_i32_50 = arith.constant 16 : i32
    %134 = vector.broadcast %c16_i32_50 : i32 to vector<1x256xi32>
    %135 = arith.cmpi slt, %133, %134 : vector<1x256xi32>
    %136 = arith.andi %131, %135 : vector<1x256xi1>
    %c0_i32_51 = arith.constant 0 : i32
    %137 = vector.broadcast %c0_i32_51 : i32 to vector<1x256xi32>
    %138 = arith.addi %1, %137 : vector<1x256xi32>
    %c0_i32_52 = arith.constant 0 : i32
    %139 = vector.broadcast %c0_i32_52 : i32 to vector<1x256xi32>
    %140 = arith.cmpi sge, %138, %139 : vector<1x256xi32>
    %141 = arith.andi %136, %140 : vector<1x256xi1>
    %c0_i32_53 = arith.constant 0 : i32
    %142 = vector.broadcast %c0_i32_53 : i32 to vector<1x256xi32>
    %143 = arith.addi %1, %142 : vector<1x256xi32>
    %c16_i32_54 = arith.constant 16 : i32
    %144 = vector.broadcast %c16_i32_54 : i32 to vector<1x256xi32>
    %145 = arith.cmpi slt, %143, %144 : vector<1x256xi32>
    %146 = arith.andi %141, %145 : vector<1x256xi1>
    %147 = arith.extui %146 : vector<1x256xi1> to vector<1x256xi32>
    %148 = arith.sitofp %147 : vector<1x256xi32> to vector<1x256xf32>
    %c1_i32_55 = arith.constant 1 : i32
    %149 = vector.broadcast %c1_i32_55 : i32 to vector<1x256xi32>
    %150 = arith.addi %0, %149 : vector<1x256xi32>
    %c0_i32_56 = arith.constant 0 : i32
    %151 = vector.broadcast %c0_i32_56 : i32 to vector<1x256xi32>
    %152 = arith.cmpi sge, %150, %151 : vector<1x256xi32>
    %c1_i32_57 = arith.constant 1 : i32
    %153 = vector.broadcast %c1_i32_57 : i32 to vector<1x256xi32>
    %154 = arith.addi %0, %153 : vector<1x256xi32>
    %c16_i32_58 = arith.constant 16 : i32
    %155 = vector.broadcast %c16_i32_58 : i32 to vector<1x256xi32>
    %156 = arith.cmpi slt, %154, %155 : vector<1x256xi32>
    %157 = arith.andi %152, %156 : vector<1x256xi1>
    %c1_i32_59 = arith.constant 1 : i32
    %158 = vector.broadcast %c1_i32_59 : i32 to vector<1x256xi32>
    %159 = arith.addi %1, %158 : vector<1x256xi32>
    %c0_i32_60 = arith.constant 0 : i32
    %160 = vector.broadcast %c0_i32_60 : i32 to vector<1x256xi32>
    %161 = arith.cmpi sge, %159, %160 : vector<1x256xi32>
    %162 = arith.andi %157, %161 : vector<1x256xi1>
    %c1_i32_61 = arith.constant 1 : i32
    %163 = vector.broadcast %c1_i32_61 : i32 to vector<1x256xi32>
    %164 = arith.addi %1, %163 : vector<1x256xi32>
    %c16_i32_62 = arith.constant 16 : i32
    %165 = vector.broadcast %c16_i32_62 : i32 to vector<1x256xi32>
    %166 = arith.cmpi slt, %164, %165 : vector<1x256xi32>
    %167 = arith.andi %162, %166 : vector<1x256xi1>
    %168 = arith.extui %167 : vector<1x256xi1> to vector<1x256xi32>
    %169 = arith.sitofp %168 : vector<1x256xi32> to vector<1x256xf32>
    %c0_63 = arith.constant 0 : index
    %c0_64 = arith.constant 0 : index
    %c0_65 = arith.constant 0 : index
    %170 = vector.load %arg1[%c0_63, %c0_64, %c0_65] : memref<1x8x256xf32, #tpu.memory_space<vmem>>, vector<1x8x256xf32>
    %171 = vector.shape_cast %170 : vector<1x8x256xf32> to vector<8x256xf32>
    %c17_i32 = arith.constant 17 : i32
    %172 = tpu.dynamic_rotate %171 by %c17_i32 dim 1 : vector<8x256xf32>, i32 -> vector<8x256xf32>
    %173 = vector.broadcast %22 : vector<1x256xf32> to vector<8x256xf32>
    %174 = arith.mulf %172, %173 : vector<8x256xf32>
    %c16_i32_66 = arith.constant 16 : i32
    %175 = tpu.dynamic_rotate %171 by %c16_i32_66 dim 1 : vector<8x256xf32>, i32 -> vector<8x256xf32>
    %176 = vector.broadcast %43 : vector<1x256xf32> to vector<8x256xf32>
    %177 = arith.mulf %175, %176 : vector<8x256xf32>
    %c15_i32 = arith.constant 15 : i32
    %178 = tpu.dynamic_rotate %171 by %c15_i32 dim 1 : vector<8x256xf32>, i32 -> vector<8x256xf32>
    %179 = vector.broadcast %64 : vector<1x256xf32> to vector<8x256xf32>
    %180 = arith.mulf %178, %179 : vector<8x256xf32>
    %c1_i32_67 = arith.constant 1 : i32
    %181 = tpu.dynamic_rotate %171 by %c1_i32_67 dim 1 : vector<8x256xf32>, i32 -> vector<8x256xf32>
    %182 = vector.broadcast %85 : vector<1x256xf32> to vector<8x256xf32>
    %183 = arith.mulf %181, %182 : vector<8x256xf32>
    %c255_i32 = arith.constant 255 : i32
    %184 = tpu.dynamic_rotate %171 by %c255_i32 dim 1 : vector<8x256xf32>, i32 -> vector<8x256xf32>
    %185 = vector.broadcast %106 : vector<1x256xf32> to vector<8x256xf32>
    %186 = arith.mulf %184, %185 : vector<8x256xf32>
    %c241_i32 = arith.constant 241 : i32
    %187 = tpu.dynamic_rotate %171 by %c241_i32 dim 1 : vector<8x256xf32>, i32 -> vector<8x256xf32>
    %188 = vector.broadcast %127 : vector<1x256xf32> to vector<8x256xf32>
    %189 = arith.mulf %187, %188 : vector<8x256xf32>
    %c240_i32 = arith.constant 240 : i32
    %190 = tpu.dynamic_rotate %171 by %c240_i32 dim 1 : vector<8x256xf32>, i32 -> vector<8x256xf32>
    %191 = vector.broadcast %148 : vector<1x256xf32> to vector<8x256xf32>
    %192 = arith.mulf %190, %191 : vector<8x256xf32>
    %c239_i32 = arith.constant 239 : i32
    %193 = tpu.dynamic_rotate %171 by %c239_i32 dim 1 : vector<8x256xf32>, i32 -> vector<8x256xf32>
    %194 = vector.broadcast %169 : vector<1x256xf32> to vector<8x256xf32>
    %195 = arith.mulf %193, %194 : vector<8x256xf32>
    %196 = tpu.concatenate %174, %177, %180, %183, %171, %186, %189, %192, %195 in 0 : vector<8x256xf32>, vector<8x256xf32>, vector<8x256xf32>, vector<8x256xf32>, vector<8x256xf32>, vector<8x256xf32>, vector<8x256xf32>, vector<8x256xf32>, vector<8x256xf32> -> vector<72x256xf32>
    %c0_68 = arith.constant 0 : index
    %c0_69 = arith.constant 0 : index
    %197 = vector.load %arg4[%c0_68, %c0_69] : memref<8x72xf32, #tpu.memory_space<vmem>>, vector<8x72xf32>
    %cst = arith.constant dense<0.000000e+00> : vector<8x256xf32>
    %198 = tpu.matmul %197, %196, %cst {dimension_numbers = #tpu.dot_dimension_numbers<[1], [0], [0], [1], [0, 0, 1, 1], [], []>} : vector<8x72xf32>, vector<72x256xf32>, vector<8x256xf32> -> vector<8x256xf32>
    %c0_70 = arith.constant 0 : index
    %c0_71 = arith.constant 0 : index
    %199 = vector.load %arg5[%c0_70, %c0_71] : memref<8x1xf32, #tpu.memory_space<vmem>>, vector<8x1xf32>
    %200 = vector.broadcast %199 : vector<8x1xf32> to vector<8x256xf32>
    %201 = arith.addf %198, %200 : vector<8x256xf32>
    %cst_72 = arith.constant 0.000000e+00 : f32
    %202 = vector.broadcast %cst_72 : f32 to vector<8x256xf32>
    %203 = arith.maximumf %201, %202 : vector<8x256xf32>
    %c17_i32_73 = arith.constant 17 : i32
    %204 = tpu.dynamic_rotate %203 by %c17_i32_73 dim 1 : vector<8x256xf32>, i32 -> vector<8x256xf32>
    %205 = vector.broadcast %22 : vector<1x256xf32> to vector<8x256xf32>
    %206 = arith.mulf %204, %205 : vector<8x256xf32>
    %c16_i32_74 = arith.constant 16 : i32
    %207 = tpu.dynamic_rotate %203 by %c16_i32_74 dim 1 : vector<8x256xf32>, i32 -> vector<8x256xf32>
    %208 = vector.broadcast %43 : vector<1x256xf32> to vector<8x256xf32>
    %209 = arith.mulf %207, %208 : vector<8x256xf32>
    %c15_i32_75 = arith.constant 15 : i32
    %210 = tpu.dynamic_rotate %203 by %c15_i32_75 dim 1 : vector<8x256xf32>, i32 -> vector<8x256xf32>
    %211 = vector.broadcast %64 : vector<1x256xf32> to vector<8x256xf32>
    %212 = arith.mulf %210, %211 : vector<8x256xf32>
    %c1_i32_76 = arith.constant 1 : i32
    %213 = tpu.dynamic_rotate %203 by %c1_i32_76 dim 1 : vector<8x256xf32>, i32 -> vector<8x256xf32>
    %214 = vector.broadcast %85 : vector<1x256xf32> to vector<8x256xf32>
    %215 = arith.mulf %213, %214 : vector<8x256xf32>
    %c255_i32_77 = arith.constant 255 : i32
    %216 = tpu.dynamic_rotate %203 by %c255_i32_77 dim 1 : vector<8x256xf32>, i32 -> vector<8x256xf32>
    %217 = vector.broadcast %106 : vector<1x256xf32> to vector<8x256xf32>
    %218 = arith.mulf %216, %217 : vector<8x256xf32>
    %c241_i32_78 = arith.constant 241 : i32
    %219 = tpu.dynamic_rotate %203 by %c241_i32_78 dim 1 : vector<8x256xf32>, i32 -> vector<8x256xf32>
    %220 = vector.broadcast %127 : vector<1x256xf32> to vector<8x256xf32>
    %221 = arith.mulf %219, %220 : vector<8x256xf32>
    %c240_i32_79 = arith.constant 240 : i32
    %222 = tpu.dynamic_rotate %203 by %c240_i32_79 dim 1 : vector<8x256xf32>, i32 -> vector<8x256xf32>
    %223 = vector.broadcast %148 : vector<1x256xf32> to vector<8x256xf32>
    %224 = arith.mulf %222, %223 : vector<8x256xf32>
    %c239_i32_80 = arith.constant 239 : i32
    %225 = tpu.dynamic_rotate %203 by %c239_i32_80 dim 1 : vector<8x256xf32>, i32 -> vector<8x256xf32>
    %226 = vector.broadcast %169 : vector<1x256xf32> to vector<8x256xf32>
    %227 = arith.mulf %225, %226 : vector<8x256xf32>
    %228 = tpu.concatenate %206, %209, %212, %215, %203, %218, %221, %224, %227 in 0 : vector<8x256xf32>, vector<8x256xf32>, vector<8x256xf32>, vector<8x256xf32>, vector<8x256xf32>, vector<8x256xf32>, vector<8x256xf32>, vector<8x256xf32>, vector<8x256xf32> -> vector<72x256xf32>
    %c0_81 = arith.constant 0 : index
    %c0_82 = arith.constant 0 : index
    %229 = vector.load %arg6[%c0_81, %c0_82] : memref<4x72xf32, #tpu.memory_space<vmem>>, vector<4x72xf32>
    %cst_83 = arith.constant dense<0.000000e+00> : vector<4x256xf32>
    %230 = tpu.matmul %229, %228, %cst_83 {dimension_numbers = #tpu.dot_dimension_numbers<[1], [0], [0], [1], [0, 0, 1, 1], [], []>} : vector<4x72xf32>, vector<72x256xf32>, vector<4x256xf32> -> vector<4x256xf32>
    %c0_84 = arith.constant 0 : index
    %c0_85 = arith.constant 0 : index
    %231 = vector.load %arg7[%c0_84, %c0_85] : memref<4x1xf32, #tpu.memory_space<vmem>>, vector<4x1xf32>
    %232 = vector.broadcast %231 : vector<4x1xf32> to vector<4x256xf32>
    %233 = arith.addf %230, %232 : vector<4x256xf32>
    %234 = vector.extract_strided_slice %171 {offsets = [0, 0], sizes = [4, 256], strides = [1, 1]} : vector<8x256xf32> to vector<4x256xf32>
    %235 = arith.addf %233, %234 : vector<4x256xf32>
    %cst_86 = arith.constant 0.000000e+00 : f32
    %236 = vector.broadcast %cst_86 : f32 to vector<4x256xf32>
    %237 = arith.maximumf %235, %236 : vector<4x256xf32>
    %c0_87 = arith.constant 0 : index
    %c0_88 = arith.constant 0 : index
    %c0_89 = arith.constant 0 : index
    %238 = vector.load %arg8[%c0_87, %c0_88, %c0_89] : memref<1x4x256xf32, #tpu.memory_space<vmem>>, vector<1x4x256xf32>
    %239 = vector.shape_cast %238 : vector<1x4x256xf32> to vector<4x256xf32>
    %240 = vector.shape_cast %237 : vector<4x256xf32> to vector<1x4x256xf32>
    tpu.vector_store %arg8[%c0_87, %c0_88, %c0_89], %240 {strides = array<i32>} : memref<1x4x256xf32, #tpu.memory_space<vmem>>, vector<1x4x256xf32>,
    return
  }
  func.func @transform_0(%arg0: i32) -> (i32, i32, i32) {
    %c0_i32 = arith.constant 0 : i32
    %c0_i32_0 = arith.constant 0 : i32
    %c0_i32_1 = arith.constant 0 : i32
    return %arg0, %c0_i32, %c0_i32_0 : i32, i32, i32
  }
  func.func @transform_1(%arg0: i32) -> (i32, i32) {
    %c0_i32 = arith.constant 0 : i32
    %c0_i32_0 = arith.constant 0 : i32
    %c0_i32_1 = arith.constant 0 : i32
    return %c0_i32, %c0_i32_0 : i32, i32
  }
  func.func @transform_2(%arg0: i32) -> (i32, i32) {
    %c0_i32 = arith.constant 0 : i32
    %c0_i32_0 = arith.constant 0 : i32
    %c0_i32_1 = arith.constant 0 : i32
    return %c0_i32, %c0_i32_0 : i32, i32
  }
  func.func @transform_3(%arg0: i32) -> (i32, i32) {
    %c0_i32 = arith.constant 0 : i32
    %c0_i32_0 = arith.constant 0 : i32
    %c0_i32_1 = arith.constant 0 : i32
    return %c0_i32, %c0_i32_0 : i32, i32
  }
  func.func @transform_4(%arg0: i32) -> (i32, i32) {
    %c0_i32 = arith.constant 0 : i32
    %c0_i32_0 = arith.constant 0 : i32
    %c0_i32_1 = arith.constant 0 : i32
    return %c0_i32, %c0_i32_0 : i32, i32
  }
  func.func @transform_5(%arg0: i32) -> (i32, i32) {
    %c0_i32 = arith.constant 0 : i32
    %c0_i32_0 = arith.constant 0 : i32
    %c0_i32_1 = arith.constant 0 : i32
    return %c0_i32, %c0_i32_0 : i32, i32
  }
  func.func @transform_6(%arg0: i32) -> (i32, i32) {
    %c0_i32 = arith.constant 0 : i32
    %c0_i32_0 = arith.constant 0 : i32
    %c0_i32_1 = arith.constant 0 : i32
    return %c0_i32, %c0_i32_0 : i32, i32
  }
  func.func @transform_7(%arg0: i32) -> (i32, i32, i32) {
    %c0_i32 = arith.constant 0 : i32
    %c0_i32_0 = arith.constant 0 : i32
    %c0_i32_1 = arith.constant 0 : i32
    return %arg0, %c0_i32, %c0_i32_0 : i32, i32, i32
  }
}

</mosaic_0001>

<llo_original>
// kernel: tpu_custom_call.1
$region0: #{tpu_custom_call.1}
  #allocation0 [shape = 'u32[]', space=smem, size = 0x4, offset = 0x4, fixed_abs, tag = 'smem constant byte address 0x4 - core index']
  #allocation1 [shape = 'u32[144,128]{1,0:T(1,128)}', space=vmem, size = 0x12000, scoped, tag = 'internal scratch']
  %s0 = inlined_call_operand.hbm [shape: f32[2,8,256], index: 0, kind: input, shape index: {}]
  %s1 = inlined_call_operand.vmem [shape: s32[1,256], index: 1, kind: input, shape index: {}]
  %s2 = inlined_call_operand.vmem [shape: s32[1,256], index: 2, kind: input, shape index: {}]
  %s3 = inlined_call_operand.vmem [shape: f32[8,72], index: 3, kind: input, shape index: {}]
  %s4 = inlined_call_operand.vmem [shape: f32[8,1], index: 4, kind: input, shape index: {}]
  %s5 = inlined_call_operand.vmem [shape: f32[4,72], index: 5, kind: input, shape index: {}]
  %s6 = inlined_call_operand.vmem [shape: f32[4,1], index: 6, kind: input, shape index: {}]
  %s7 = inlined_call_operand.hbm [shape: f32[2,4,256], index: 7, kind: output, shape index: {}]
  %s8 = sld [smem:[#allocation0]]
  $region65: #{tpu_custom_call.1} parent=0
    _
  %s10 = ssub.s32 1, %s8
  %s11 = scalar_select 0, %s10, %s8
  $region1: #{tpu_custom_call.1} parent=0
    #allocation2 [shape = 'u8[16384]{0}', space=vmem, size = 0x4000, scoped, tag = 'input window, operand 0']
    #allocation3 [shape = 's32[2]{0}', space=sflag, size = 0x8, scoped, tag = 'scoped memory for tpu_custom_call.1']
    #allocation4 [shape = 's32[2]{0}', space=sflag, size = 0x8, scoped, tag = 'scoped memory for tpu_custom_call.1']
    #allocation5 [shape = 'u8[8192]{0}', space=vmem, size = 0x2000, scoped, tag = 'output window, operand 0']
    %12 = vsyncpa [#allocation3], 0
    %s13 = scalar_lea.sflag [#allocation3], 1
    %14 = vsyncpa %s13, 0
    %15 = vsyncpa [#allocation4], 0
    %s16 = scalar_lea.sflag [#allocation4], 1
    %17 = vsyncpa %s16, 0
    loop: start=0, step=1, limit=4
    $region2: #{tpu_custom_call.1} parent=1 // loop_pre_header
      _
    $region3: #{tpu_custom_call.1} parent=1 // loop_header
      %s19 = sphi 0, %s23
      %p20 = scmp.ge.s32.totalorder %s19, 4
      %s29 = sphi 0, %s31
      %s32 = sphi 0, %s29
      %s33 = sphi 0, %s32
      %s49 = sphi 0, %s33
      %s53 = sphi 0, %s53
      %s55 = sphi 0, %s53
      %s56 = sphi 0, %s55
      %s70 = sphi 0, %s56
      %s74 = sphi 0, %s74
      %s76 = sphi 0, %s74
      %s77 = sphi 0, %s76
      %s91 = sphi 0, %s77
      %s95 = sphi 0, %s95
      %s97 = sphi 0, %s95
      %s98 = sphi 0, %s97
      %s112 = sphi 0, %s98
      %s116 = sphi 0, %s116
      %s118 = sphi 0, %s116
      %s119 = sphi 0, %s118
      %s133 = sphi 0, %s119
      %s137 = sphi 0, %s137
      %s139 = sphi 0, %s137
      %s140 = sphi 0, %s139
      %s154 = sphi 0, %s140
      %s158 = sphi 0, %s158
      %s160 = sphi 0, %s158
      %s161 = sphi 0, %s160
      %s175 = sphi 0, %s161
      %s181 = sphi 0, %s183
      %s184 = sphi 0, %s181
      %s185 = sphi 0, %s184
      %s201 = sphi 0, %s185
    $region4: #{tpu_custom_call.1} parent=1 // loop_header_branch
      %22 = sbr.rel (%p20) target = $region8
    $region5: #{tpu_custom_call.1} parent=1 // loop_body
      %s24 = ssub.s32 %s19, 1
      %s25 = ssub.s32 %s19, 2
      %s26 = sadd.s32 %s19, 1
      %s27 = ssub.s32 %s19, %s26
      %p28 = scmp.eq.s32.totalorder %s27, 0
      %s30 = sadd.s32 %s29, 1
      %s31 = scalar_select %p28, %s29, %s30
      %p34 = pneg %p28
      %p35 = scmp.eq.s32.totalorder %s19, 1
      %p36 = por %p34, %p35
      %p37 = scmp.ne.s32.totalorder %s29, %s32
      %p38 = scmp.eq.s32.totalorder %s19, 0
      %p39 = por %p37, %p38
      %p40 = scmp.ne.s32.totalorder %s29, %s32
      %p41 = scmp.eq.s32.totalorder %s24, 1
      %p42 = por %p40, %p41
      %p43 = scmp.ne.s32.totalorder %s32, %s33
      %p44 = scmp.eq.s32.totalorder %s24, 0
      %p45 = por %p43, %p44
      %p46 = scmp.ne.s32.totalorder %s32, %s33
      %p47 = scmp.eq.s32.totalorder %s25, 1
      %p48 = por %p46, %p47
      %p50 = scmp.ne.s32.totalorder %s33, %s49
      %p51 = scmp.eq.s32.totalorder %s25, 0
      %p52 = por %p50, %p51
      %s54 = sadd.s32 %s53, 1
      %p57 = scmp.eq.s32.totalorder %s19, 1
      %p58 = scmp.ne.s32.totalorder %s53, %s55
      %p59 = scmp.eq.s32.totalorder %s19, 0
      %p60 = por %p58, %p59
      %p61 = scmp.ne.s32.totalorder %s53, %s55
      %p62 = scmp.eq.s32.totalorder %s24, 1
      %p63 = por %p61, %p62
      %p64 = scmp.ne.s32.totalorder %s55, %s56
      %p65 = scmp.eq.s32.totalorder %s24, 0
      %p66 = por %p64, %p65
      %p67 = scmp.ne.s32.totalorder %s55, %s56
      %p68 = scmp.eq.s32.totalorder %s25, 1
      %p69 = por %p67, %p68
      %p71 = scmp.ne.s32.totalorder %s56, %s70
      %p72 = scmp.eq.s32.totalorder %s25, 0
      %p73 = por %p71, %p72
      %s75 = sadd.s32 %s74, 1
      %p78 = scmp.eq.s32.totalorder %s19, 1
      %p79 = scmp.ne.s32.totalorder %s74, %s76
      %p80 = scmp.eq.s32.totalorder %s19, 0
      %p81 = por %p79, %p80
      %p82 = scmp.ne.s32.totalorder %s74, %s76
      %p83 = scmp.eq.s32.totalorder %s24, 1
      %p84 = por %p82, %p83
      %p85 = scmp.ne.s32.totalorder %s76, %s77
      %p86 = scmp.eq.s32.totalorder %s24, 0
      %p87 = por %p85, %p86
      %p88 = scmp.ne.s32.totalorder %s76, %s77
      %p89 = scmp.eq.s32.totalorder %s25, 1
      %p90 = por %p88, %p89
      %p92 = scmp.ne.s32.totalorder %s77, %s91
      %p93 = scmp.eq.s32.totalorder %s25, 0
      %p94 = por %p92, %p93
      %s96 = sadd.s32 %s95, 1
      %p99 = scmp.eq.s32.totalorder %s19, 1
      %p100 = scmp.ne.s32.totalorder %s95, %s97
      %p101 = scmp.eq.s32.totalorder %s19, 0
      %p102 = por %p100, %p101
      %p103 = scmp.ne.s32.totalorder %s95, %s97
      %p104 = scmp.eq.s32.totalorder %s24, 1
      %p105 = por %p103, %p104
      %p106 = scmp.ne.s32.totalorder %s97, %s98
      %p107 = scmp.eq.s32.totalorder %s24, 0
      %p108 = por %p106, %p107
      %p109 = scmp.ne.s32.totalorder %s97, %s98
      %p110 = scmp.eq.s32.totalorder %s25, 1
      %p111 = por %p109, %p110
      %p113 = scmp.ne.s32.totalorder %s98, %s112
      %p114 = scmp.eq.s32.totalorder %s25, 0
      %p115 = por %p113, %p114
      %s117 = sadd.s32 %s116, 1
      %p120 = scmp.eq.s32.totalorder %s19, 1
      %p121 = scmp.ne.s32.totalorder %s116, %s118
      %p122 = scmp.eq.s32.totalorder %s19, 0
      %p123 = por %p121, %p122
      %p124 = scmp.ne.s32.totalorder %s116, %s118
      %p125 = scmp.eq.s32.totalorder %s24, 1
      %p126 = por %p124, %p125
      %p127 = scmp.ne.s32.totalorder %s118, %s119
      %p128 = scmp.eq.s32.totalorder %s24, 0
      %p129 = por %p127, %p128
      %p130 = scmp.ne.s32.totalorder %s118, %s119
      %p131 = scmp.eq.s32.totalorder %s25, 1
      %p132 = por %p130, %p131
      %p134 = scmp.ne.s32.totalorder %s119, %s133
      %p135 = scmp.eq.s32.totalorder %s25, 0
      %p136 = por %p134, %p135
      %s138 = sadd.s32 %s137, 1
      %p141 = scmp.eq.s32.totalorder %s19, 1
      %p142 = scmp.ne.s32.totalorder %s137, %s139
      %p143 = scmp.eq.s32.totalorder %s19, 0
      %p144 = por %p142, %p143
      %p145 = scmp.ne.s32.totalorder %s137, %s139
      %p146 = scmp.eq.s32.totalorder %s24, 1
      %p147 = por %p145, %p146
      %p148 = scmp.ne.s32.totalorder %s139, %s140
      %p149 = scmp.eq.s32.totalorder %s24, 0
      %p150 = por %p148, %p149
      %p151 = scmp.ne.s32.totalorder %s139, %s140
      %p152 = scmp.eq.s32.totalorder %s25, 1
      %p153 = por %p151, %p152
      %p155 = scmp.ne.s32.totalorder %s140, %s154
      %p156 = scmp.eq.s32.totalorder %s25, 0
      %p157 = por %p155, %p156
      %s159 = sadd.s32 %s158, 1
      %p162 = scmp.eq.s32.totalorder %s19, 1
      %p163 = scmp.ne.s32.totalorder %s158, %s160
      %p164 = scmp.eq.s32.totalorder %s19, 0
      %p165 = por %p163, %p164
      %p166 = scmp.ne.s32.totalorder %s158, %s160
      %p167 = scmp.eq.s32.totalorder %s24, 1
      %p168 = por %p166, %p167
      %p169 = scmp.ne.s32.totalorder %s160, %s161
      %p170 = scmp.eq.s32.totalorder %s24, 0
      %p171 = por %p169, %p170
      %p172 = scmp.ne.s32.totalorder %s160, %s161
      %p173 = scmp.eq.s32.totalorder %s25, 1
      %p174 = por %p172, %p173
      %p176 = scmp.ne.s32.totalorder %s161, %s175
      %p177 = scmp.eq.s32.totalorder %s25, 0
      %p178 = por %p176, %p177
      %s179 = ssub.s32 %s19, %s26
      %p180 = scmp.eq.s32.totalorder %s179, 0
      %s182 = sadd.s32 %s181, 1
      %s183 = scalar_select %p180, %s181, %s182
      %p186 = pneg %p180
      %p187 = scmp.eq.s32.totalorder %s19, 1
      %p188 = por %p186, %p187
      %p189 = scmp.ne.s32.totalorder %s181, %s184
      %p190 = scmp.eq.s32.totalorder %s19, 0
      %p191 = por %p189, %p190
      %p192 = scmp.ne.s32.totalorder %s181, %s184
      %p193 = scmp.eq.s32.totalorder %s24, 1
      %p194 = por %p192, %p193
      %p195 = scmp.ne.s32.totalorder %s184, %s185
      %p196 = scmp.eq.s32.totalorder %s24, 0
      %p197 = por %p195, %p196
      %p198 = scmp.ne.s32.totalorder %s184, %s185
      %p199 = scmp.eq.s32.totalorder %s25, 1
      %p200 = por %p198, %p199
      %p202 = scmp.ne.s32.totalorder %s185, %s201
      %p203 = scmp.eq.s32.totalorder %s25, 0
      %p204 = por %p202, %p203
      %p205 = scmp.le.s32.totalorder 1, %s19
      %p206 = scmp.lt.s32.totalorder %s19, 3
      %p207 = pnand %p205, %p206
      %p208 = pneg %p207
      // Predicated region
      $region9: #{tpu_custom_call.1} parent=5 // pred_check
        _
      $region10: #{tpu_custom_call.1} parent=5 // pred_check_branch
        %210 = sbr.rel (%p207) target = $region12
      $region11: #{tpu_custom_call.1} parent=5 // pred_region
        %s211 = ssub.s32 %s19, 1
        // Predicated region
        $region13: #{tpu_custom_call.1} parent=11 // pred_check
          %p212 = pneg %p66
        $region14: #{tpu_custom_call.1} parent=11 // pred_check_branch
          %214 = sbr.rel (%p212) target = $region16
        $region15: #{tpu_custom_call.1} parent=11 // pred_region
          _
        $region16: #{tpu_custom_call.1} parent=11 // pred_fallthru
          _
        // Predicated region
        $region17: #{tpu_custom_call.1} parent=11 // pred_check
          %p215 = pneg %p87
        $region18: #{tpu_custom_call.1} parent=11 // pred_check_branch
          %217 = sbr.rel (%p215) target = $region20
        $region19: #{tpu_custom_call.1} parent=11 // pred_region
          _
        $region20: #{tpu_custom_call.1} parent=11 // pred_fallthru
          _
        // Predicated region
        $region21: #{tpu_custom_call.1} parent=11 // pred_check
          %p218 = pneg %p108
        $region22: #{tpu_custom_call.1} parent=11 // pred_check_branch
          %220 = sbr.rel (%p218) target = $region24
        $region23: #{tpu_custom_call.1} parent=11 // pred_region
          _
        $region24: #{tpu_custom_call.1} parent=11 // pred_fallthru
          _
        // Predicated region
        $region25: #{tpu_custom_call.1} parent=11 // pred_check
          %p221 = pneg %p129
        $region26: #{tpu_custom_call.1} parent=11 // pred_check_branch
          %223 = sbr.rel (%p221) target = $region28
        $region27: #{tpu_custom_call.1} parent=11 // pred_region
          _
        $region28: #{tpu_custom_call.1} parent=11 // pred_fallthru
          _
        // Predicated region
        $region29: #{tpu_custom_call.1} parent=11 // pred_check
          %p224 = pneg %p150
        $region30: #{tpu_custom_call.1} parent=11 // pred_check_branch
          %226 = sbr.rel (%p224) target = $region32
        $region31: #{tpu_custom_call.1} parent=11 // pred_region
          _
        $region32: #{tpu_custom_call.1} parent=11 // pred_fallthru
          _
        // Predicated region
        $region33: #{tpu_custom_call.1} parent=11 // pred_check
          %p227 = pneg %p171
        $region34: #{tpu_custom_call.1} parent=11 // pred_check_branch
          %229 = sbr.rel (%p227) target = $region36
        $region35: #{tpu_custom_call.1} parent=11 // pred_region
          _
        $region36: #{tpu_custom_call.1} parent=11 // pred_fallthru
          _
      $region12: #{tpu_custom_call.1} parent=5 // pred_fallthru
        _
      %p230 = scmp.lt.s32.totalorder %s19, 2
      // Predicated region
      $region37: #{tpu_custom_call.1} parent=5 // pred_check
        %p231 = pneg %p230
      $region38: #{tpu_custom_call.1} parent=5 // pred_check_branch
        %233 = sbr.rel (%p231) target = $region40
      $region39: #{tpu_custom_call.1} parent=5 // pred_region
        // Predicated region
        $region41: #{tpu_custom_call.1} parent=39 // pred_check
          %p234 = pneg %p39
        $region42: #{tpu_custom_call.1} parent=39 // pred_check_branch
          %236 = sbr.rel (%p234) target = $region44
        $region43: #{tpu_custom_call.1} parent=39 // pred_region
          %s237 = sand.u32 %s29, 1
          %s238 = scalar_lea.sflag [#allocation3], %s237
          %s239 = sand.u32 %s29, 1
          %s240 = smul.addr %s239, 16
          %s241 = scalar_lea.vmem [#allocation2], %s240
          %s243 = ssub.s32 256, 256
          %244 = vsyncadd %s238, %s243
          %s245 = smul.addr %s19, 2
          %s246 = smul.addr %s245, 128
          %s247 = scalar_lea.hbm %s0, %s246
          %s249 = sshll.u32 %s241, 4
          %s250 = int_to_ptr.vmem [resolvable:$true] %s249
          %252 = dma.hbm_to_vmem [thread:$0]  %s247, 256, %s250, %s238
        $region44: #{tpu_custom_call.1} parent=39 // pred_fallthru
          _
      $region40: #{tpu_custom_call.1} parent=5 // pred_fallthru
        _
      %p253 = scmp.le.s32.totalorder 1, %s19
      %p254 = scmp.lt.s32.totalorder %s19, 3
      %p255 = pnand %p253, %p254
      %p256 = pneg %p255
      // Predicated region
      $region45: #{tpu_custom_call.1} parent=5 // pred_check
        _
      $region46: #{tpu_custom_call.1} parent=5 // pred_check_branch
        %258 = sbr.rel (%p255) target = $region48
      $region47: #{tpu_custom_call.1} parent=5 // pred_region
        %s259 = ssub.s32 %s19, 1
        %s260 = sand.u32 %s32, 1
        %s261 = scalar_lea.sflag [#allocation3], %s260
        %s262 = sand.u32 %s32, 1
        %s263 = smul.addr %s262, 16
        %s264 = scalar_lea.vmem [#allocation2], %s263
        // Predicated region
        $region49: #{tpu_custom_call.1} parent=47 // pred_check
          %p265 = pneg %p45
        $region50: #{tpu_custom_call.1} parent=47 // pred_check_branch
          %267 = sbr.rel (%p265) target = $region52
        $region51: #{tpu_custom_call.1} parent=47 // pred_region
          %268 = dma.done %s261, 256
        $region52: #{tpu_custom_call.1} parent=47 // pred_fallthru
          _
        %s269 = sand.u32 %s32, 1
        %s270 = scalar_lea.sflag [#allocation3], %s269
        %s271 = sand.u32 %s32, 1
        %s272 = smul.addr %s271, 16
        %s273 = scalar_lea.vmem [#allocation2], %s272
        %p274 = pneg %p45
        %p275 = pneg %p42
        %p276 = pneg %p66
        %p277 = pneg %p63
        %p278 = pneg %p87
        %p279 = pneg %p84
        %p280 = pneg %p108
        %p281 = pneg %p105
        %p282 = pneg %p129
        %p283 = pneg %p126
        %p284 = pneg %p150
        %p285 = pneg %p147
        %p286 = pneg %p171
        %p287 = pneg %p168
        %p288 = pneg %p197
        %p289 = pneg %p194
        %s290 = sand.u32 %s184, 1
        %s291 = scalar_lea.sflag [#allocation4], %s290
        %s292 = sand.u32 %s184, 1
        %s293 = smul.addr %s292, 8
        %s294 = scalar_lea.vmem [#allocation5], %s293
        %v295 = vld [vmem:[%s1] sm:$0x3]
        %v296 = vld [vmem:[%s2] sm:$0x3]
        %v297 = vadd.s32 %v295, 4294967295
        %vm298 = vcmp.ge.s32.totalorder %v297, 0
        %vm299 = vcmp.lt.s32.totalorder %v297, 16
        %vm300 = vmand %vm298, %vm299
        %v301 = vadd.s32 %v296, 4294967295
        %vm302 = vcmp.ge.s32.totalorder %v301, 0
        %vm303 = vmand %vm300, %vm302
        %vm304 = vcmp.lt.s32.totalorder %v301, 16
        %vm305 = vmand %vm303, %vm304
        %v306 = vsel %vm305, 1, 0
        %v307 = vcvt.s32.f32 %v306
        %vm308 = vcmp.ge.s32.totalorder %v296, 0
        %vm309 = vmand %vm300, %vm308
        %vm310 = vcmp.lt.s32.totalorder %v296, 16
        %vm311 = vmand %vm309, %vm310
        %v312 = vsel %vm311, 1, 0
        %v313 = vcvt.s32.f32 %v312
        %v314 = vadd.s32 %v296, 1
        %vm315 = vcmp.ge.s32.totalorder %v314, 0
        %vm316 = vmand %vm300, %vm315
        %vm317 = vcmp.lt.s32.totalorder %v314, 16
        %vm318 = vmand %vm316, %vm317
        %v319 = vsel %vm318, 1, 0
        %v320 = vcvt.s32.f32 %v319
        %vm321 = vcmp.ge.s32.totalorder %v295, 0
        %vm322 = vcmp.lt.s32.totalorder %v295, 16
        %vm323 = vmand %vm321, %vm322
        %vm324 = vmand %vm323, %vm302
        %vm325 = vmand %vm324, %vm304
        %v326 = vsel %vm325, 1, 0
        %v327 = vcvt.s32.f32 %v326
        %vm328 = vmand %vm323, %vm315
        %vm329 = vmand %vm328, %vm317
        %v330 = vsel %vm329, 1, 0
        %v331 = vcvt.s32.f32 %v330
        %v332 = vadd.s32 %v295, 1
        %vm333 = vcmp.ge.s32.totalorder %v332, 0
        %vm334 = vcmp.lt.s32.totalorder %v332, 16
        %vm335 = vmand %vm333, %vm334
        %vm336 = vmand %vm335, %vm302
        %vm337 = vmand %vm336, %vm304
        %v338 = vsel %vm337, 1, 0
        %v339 = vcvt.s32.f32 %v338
        %vm340 = vmand %vm335, %vm308
        %vm341 = vmand %vm340, %vm310
        %v342 = vsel %vm341, 1, 0
        %v343 = vcvt.s32.f32 %v342
        %vm344 = vmand %vm335, %vm315
        %vm345 = vmand %vm344, %vm317
        %v346 = vsel %vm345, 1, 0
        %v347 = vcvt.s32.f32 %v346
        %v348 = vld [vmem:[%s264] sm:$0xff]
        %v349 = vld [vmem:[%s264 + $0x8] sm:$0xff]
        %350 = vrot.lane.b32.xlu0 %v348, 17
        %v351 = vpop.permute.xlu0 %350
        %352 = vrot.lane.b32.xlu0 %v349, 17
        %v353 = vpop.permute.xlu0 %352
        %v354 = vlaneseq
        %v355 = vand.u32 %v354, 127
        %vm356 = vcmp.lt.s32.totalorder %v355, 17
        %v357 = vsel %vm356, %v351, %v353
        %v358 = vsel %vm356, %v353, %v351
        %v360 = vlaneseq
        %v361 = vshrl.u32 %v360, 7
        %v362 = vsub.s32 0, %v361
        %v363 = vrot.slane %v307, %v362
        %v364 = vlaneseq
        %v365 = vshrl.u32 %v364, 7
        %v366 = vsub.s32 1, %v365
        %v367 = vrot.slane %v307, %v366
        %v370 = vmul.f32 %v358, %v363
        %v371 = vmul.f32 %v357, %v367
        %372 = vrot.lane.b32.xlu0 %v348, 16
        %v373 = vpop.permute.xlu0 %372
        %374 = vrot.lane.b32.xlu0 %v349, 16
        %v375 = vpop.permute.xlu0 %374
        %vm376 = vcmp.lt.s32.totalorder %v355, 16
        %v377 = vsel %vm376, %v373, %v375
        %v378 = vsel %vm376, %v375, %v373
        %v380 = vlaneseq
        %v381 = vshrl.u32 %v380, 7
        %v382 = vsub.s32 0, %v381
        %v383 = vrot.slane %v313, %v382
        %v384 = vlaneseq
        %v385 = vshrl.u32 %v384, 7
        %v386 = vsub.s32 1, %v385
        %v387 = vrot.slane %v313, %v386
        %v390 = vmul.f32 %v378, %v383
        %v391 = vmul.f32 %v377, %v387
        %392 = vrot.lane.b32.xlu0 %v348, 15
        %v393 = vpop.permute.xlu0 %392
        %394 = vrot.lane.b32.xlu0 %v349, 15
        %v395 = vpop.permute.xlu0 %394
        %vm396 = vcmp.lt.s32.totalorder %v355, 15
        %v397 = vsel %vm396, %v393, %v395
        %v398 = vsel %vm396, %v395, %v393
        %v400 = vlaneseq
        %v401 = vshrl.u32 %v400, 7
        %v402 = vsub.s32 0, %v401
        %v403 = vrot.slane %v320, %v402
        %v404 = vlaneseq
        %v405 = vshrl.u32 %v404, 7
        %v406 = vsub.s32 1, %v405
        %v407 = vrot.slane %v320, %v406
        %v410 = vmul.f32 %v398, %v403
        %v411 = vmul.f32 %v397, %v407
        %412 = vrot.lane.b32.xlu0 %v348, 1
        %v413 = vpop.permute.xlu0 %412
        %414 = vrot.lane.b32.xlu0 %v349, 1
        %v415 = vpop.permute.xlu0 %414
        %vm416 = vcmp.lt.s32.totalorder %v355, 1
        %v417 = vsel %vm416, %v413, %v415
        %v418 = vsel %vm416, %v415, %v413
        %v420 = vlaneseq
        %v421 = vshrl.u32 %v420, 7
        %v422 = vsub.s32 0, %v421
        %v423 = vrot.slane %v327, %v422
        %v424 = vlaneseq
        %v425 = vshrl.u32 %v424, 7
        %v426 = vsub.s32 1, %v425
        %v427 = vrot.slane %v327, %v426
        %v430 = vmul.f32 %v418, %v423
        %v431 = vmul.f32 %v417, %v427
        %432 = vrot.lane.b32.xlu0 %v348, 127
        %v433 = vpop.permute.xlu0 %432
        %434 = vrot.lane.b32.xlu0 %v349, 127
        %v435 = vpop.permute.xlu0 %434
        %vm436 = vcmp.lt.s32.totalorder %v355, 127
        %v437 = vsel %vm436, %v433, %v435
        %v438 = vsel %vm436, %v435, %v433
        %v440 = vlaneseq
        %v441 = vshrl.u32 %v440, 7
        %v442 = vsub.s32 0, %v441
        %v443 = vrot.slane %v331, %v442
        %v444 = vlaneseq
        %v445 = vshrl.u32 %v444, 7
        %v446 = vsub.s32 1, %v445
        %v447 = vrot.slane %v331, %v446
        %v450 = vmul.f32 %v437, %v443
        %v451 = vmul.f32 %v438, %v447
        %452 = vrot.lane.b32.xlu0 %v348, 113
        %v453 = vpop.permute.xlu0 %452
        %454 = vrot.lane.b32.xlu0 %v349, 113
        %v455 = vpop.permute.xlu0 %454
        %vm456 = vcmp.lt.s32.totalorder %v355, 113
        %v457 = vsel %vm456, %v453, %v455
        %v458 = vsel %vm456, %v455, %v453
        %v460 = vlaneseq
        %v461 = vshrl.u32 %v460, 7
        %v462 = vsub.s32 0, %v461
        %v463 = vrot.slane %v339, %v462
        %v464 = vlaneseq
        %v465 = vshrl.u32 %v464, 7
        %v466 = vsub.s32 1, %v465
        %v467 = vrot.slane %v339, %v466
        %v470 = vmul.f32 %v457, %v463
        %v471 = vmul.f32 %v458, %v467
        %472 = vrot.lane.b32.xlu0 %v348, 112
        %v473 = vpop.permute.xlu0 %472
        %474 = vrot.lane.b32.xlu0 %v349, 112
        %v475 = vpop.permute.xlu0 %474
        %vm476 = vcmp.lt.s32.totalorder %v355, 112
        %v477 = vsel %vm476, %v473, %v475
        %v478 = vsel %vm476, %v475, %v473
        %v480 = vlaneseq
        %v481 = vshrl.u32 %v480, 7
        %v482 = vsub.s32 0, %v481
        %v483 = vrot.slane %v343, %v482
        %v484 = vlaneseq
        %v485 = vshrl.u32 %v484, 7
        %v486 = vsub.s32 1, %v485
        %v487 = vrot.slane %v343, %v486
        %v490 = vmul.f32 %v477, %v483
        %v491 = vmul.f32 %v478, %v487
        %492 = vrot.lane.b32.xlu0 %v348, 111
        %v493 = vpop.permute.xlu0 %492
        %494 = vrot.lane.b32.xlu0 %v349, 111
        %v495 = vpop.permute.xlu0 %494
        %vm496 = vcmp.lt.s32.totalorder %v355, 111
        %v497 = vsel %vm496, %v493, %v495
        %v498 = vsel %vm496, %v495, %v493
        %v500 = vlaneseq
        %v501 = vshrl.u32 %v500, 7
        %v502 = vsub.s32 0, %v501
        %v503 = vrot.slane %v347, %v502
        %v504 = vlaneseq
        %v505 = vshrl.u32 %v504, 7
        %v506 = vsub.s32 1, %v505
        %v507 = vrot.slane %v347, %v506
        %v510 = vmul.f32 %v497, %v503
        %v511 = vmul.f32 %v498, %v507
        %v512 = vld [vmem:[%s3] sm:$0xff]
        %v513 = vld [vmem:[%s4] sm:$0xff]
        %515 = vset.pattern.permute.xlu0 0
        %516 = vperm.xlu0 %515, %v513
        %v517 = vpop.permute.xlu0 %516
        %vm519 = vcmask 588800
        %v521 = vsel %vm519, %v512, 0
        %523 = vmatprep.subr.mxu0 %v371
        %524 = vmatpush1.msra.mxu0 %v370
        %525 = vmatprep.subr.mxu0 %v391
        %526 = vmatpush1.msra.mxu0 %v390
        %527 = vmatprep.subr.mxu0 %v411
        %528 = vmatpush1.msra.mxu0 %v410
        %529 = vmatprep.subr.mxu0 %v431
        %530 = vmatpush1.msra.mxu0 %v430
        %531 = vmatprep.subr.mxu0 %v349
        %532 = vmatpush1.msra.mxu0 %v348
        %533 = vmatprep.subr.mxu0 %v451
        %534 = vmatpush1.msra.mxu0 %v450
        %535 = vmatprep.subr.mxu0 %v471
        %536 = vmatpush1.msra.mxu0 %v470
        %537 = vmatprep.subr.mxu0 %v491
        %538 = vmatpush1.msra.mxu0 %v490
        %539 = vmatprep.subr.mxu0 %v511
        %540 = vmatpush1.msra.mxu0 %v510
        %541 = vmatprep.subr.mxu0 0.0
        %542 = vmatpush1.msra.mxu0 0.0
        %543 = vmatprep.subr.mxu0 0.0
        %544 = vmatpush1.msra.mxu0 0.0
        %545 = vmatprep.subr.mxu0 0.0
        %546 = vmatpush1.msra.mxu0 0.0
        %547 = vmatprep.subr.mxu0 0.0
        %548 = vmatpush1.msra.mxu0 0.0
        %549 = vmatprep.subr.mxu0 0.0
        %550 = vmatpush1.msra.mxu0 0.0
        %551 = vmatprep.subr.mxu0 0.0
        %552 = vmatpush1.msra.mxu0 0.0
        %553 = vmatprep.subr.mxu0 0.0
        %554 = vmatpush1.msra.mxu0 0.0
        %555 = vmatprep.subr.mxu0 0.0
        %556 = vmatpush1.msra.mxu0 0.0
        %557 = vmatprep.subr.mxu0 0.0
        %558 = vmatpush1.msra.mxu0 0.0
        %559 = vmatprep.subr.mxu0 0.0
        %560 = vmatpush1.msra.mxu0 0.0
        %561 = vmatprep.subr.mxu0 0.0
        %562 = vmatpush1.msra.mxu0 0.0
        %563 = vmatprep.subr.mxu0 0.0
        %564 = vmatpush1.msra.mxu0 0.0
        %565 = vmatprep.subr.mxu0 0.0
        %566 = vmatpush1.msra.mxu0 0.0
        %567 = vmatprep.subr.mxu0 0.0
        %568 = vmatpush1.msra.mxu0 0.0
        %569 = vmatprep.subr.mxu0 0.0
        %570 = vmatpush1.msra.mxu0 0.0
        %571 = vmatprep.subr.mxu0 0.0
        %572 = vmatpush1.msra.mxu0 0.0
        %573 = vmatprep.subr.mxu0 0.0
        %574 = vmatpush1.msra.mxu0 0.0
        %575 = vmatprep.subr.mxu0 0.0
        %576 = vmatpush1.msra.mxu0 0.0
        %577 = vmatprep.subr.mxu0 0.0
        %578 = vmatpush1.msra.mxu0 0.0
        %579 = vmatprep.subr.mxu0 0.0
        %580 = vmatpush1.msra.mxu0 0.0
        %581 = vmatprep.subr.mxu0 0.0
        %582 = vmatpush1.msra.mxu0 0.0
        %583 = vmatprep.subr.mxu0 0.0
        %584 = vmatpush1.msra.mxu0 0.0
        %585 = vmatprep.subr.mxu0 0.0
        %586 = vmatpush1.msra.mxu0 0.0
        %587 = vmatprep.mubr.f32.mxu0 0.0
        %588 = vmatmul.mubr.f32.gmra.mrb[0].mxu0 %v521
        %v589 = vpop.f32.mrb[0].mxu0
        %v590 = vadd.f32 %v517, %v589
        %v591 = vpop.f32.mrb[0].mxu0
        %v592 = vadd.f32 %v517, %v591
        %593 = vdwg.mxu0
        %v594 = vmax.f32 %v590, 0.0
        %v595 = vmax.f32 %v592, 0.0
        %596 = vrot.lane.b32.xlu0 %v594, 17
        %v597 = vpop.permute.xlu0 %596
        %598 = vrot.lane.b32.xlu0 %v595, 17
        %v599 = vpop.permute.xlu0 %598
        %v600 = vsel %vm356, %v597, %v599
        %v601 = vsel %vm356, %v599, %v597
        %v602 = vmul.f32 %v601, %v363
        %v603 = vmul.f32 %v600, %v367
        %604 = vrot.lane.b32.xlu0 %v594, 16
        %v605 = vpop.permute.xlu0 %604
        %606 = vrot.lane.b32.xlu0 %v595, 16
        %v607 = vpop.permute.xlu0 %606
        %v608 = vsel %vm376, %v605, %v607
        %v609 = vsel %vm376, %v607, %v605
        %v610 = vmul.f32 %v609, %v383
        %v611 = vmul.f32 %v608, %v387
        %612 = vrot.lane.b32.xlu0 %v594, 15
        %v613 = vpop.permute.xlu0 %612
        %614 = vrot.lane.b32.xlu0 %v595, 15
        %v615 = vpop.permute.xlu0 %614
        %v616 = vsel %vm396, %v613, %v615
        %v617 = vsel %vm396, %v615, %v613
        %v618 = vmul.f32 %v617, %v403
        %v619 = vmul.f32 %v616, %v407
        %620 = vrot.lane.b32.xlu0 %v594, 1
        %v621 = vpop.permute.xlu0 %620
        %622 = vrot.lane.b32.xlu0 %v595, 1
        %v623 = vpop.permute.xlu0 %622
        %v624 = vsel %vm416, %v621, %v623
        %v625 = vsel %vm416, %v623, %v621
        %v626 = vmul.f32 %v625, %v423
        %v627 = vmul.f32 %v624, %v427
        %628 = vrot.lane.b32.xlu0 %v594, 127
        %v629 = vpop.permute.xlu0 %628
        %630 = vrot.lane.b32.xlu0 %v595, 127
        %v631 = vpop.permute.xlu0 %630
        %v632 = vsel %vm436, %v629, %v631
        %v633 = vsel %vm436, %v631, %v629
        %v634 = vmul.f32 %v632, %v443
        %v635 = vmul.f32 %v633, %v447
        %636 = vrot.lane.b32.xlu0 %v594, 113
        %v637 = vpop.permute.xlu0 %636
        %638 = vrot.lane.b32.xlu0 %v595, 113
        %v639 = vpop.permute.xlu0 %638
        %v640 = vsel %vm456, %v637, %v639
        %v641 = vsel %vm456, %v639, %v637
        %v642 = vmul.f32 %v640, %v463
        %v643 = vmul.f32 %v641, %v467
        %644 = vrot.lane.b32.xlu0 %v594, 112
        %v645 = vpop.permute.xlu0 %644
        %646 = vrot.lane.b32.xlu0 %v595, 112
        %v647 = vpop.permute.xlu0 %646
        %v648 = vsel %vm476, %v645, %v647
        %v649 = vsel %vm476, %v647, %v645
        %v650 = vmul.f32 %v648, %v483
        %v651 = vmul.f32 %v649, %v487
        %652 = vrot.lane.b32.xlu0 %v594, 111
        %v653 = vpop.permute.xlu0 %652
        %654 = vrot.lane.b32.xlu0 %v595, 111
        %v655 = vpop.permute.xlu0 %654
        %v656 = vsel %vm496, %v653, %v655
        %v657 = vsel %vm496, %v655, %v653
        %v658 = vmul.f32 %v656, %v503
        %v659 = vmul.f32 %v657, %v507
        %v660 = vld [vmem:[%s5] sm:$0xf]
        %v661 = vld [vmem:[%s6] sm:$0xf]
        %663 = vset.pattern.permute.xlu0 0
        %664 = vperm.xlu0 %663, %v661
        %v665 = vpop.permute.xlu0 %664
        %v668 = vsel %vm519, %v660, 0
        %670 = vmatprep.subr.mxu0 %v603
        %671 = vmatpush1.msra.mxu0 %v602
        %672 = vmatprep.subr.mxu0 %v611
        %673 = vmatpush1.msra.mxu0 %v610
        %674 = vmatprep.subr.mxu0 %v619
        %675 = vmatpush1.msra.mxu0 %v618
        %676 = vmatprep.subr.mxu0 %v627
        %677 = vmatpush1.msra.mxu0 %v626
        %678 = vmatprep.subr.mxu0 %v595
        %679 = vmatpush1.msra.mxu0 %v594
        %680 = vmatprep.subr.mxu0 %v635
        %681 = vmatpush1.msra.mxu0 %v634
        %682 = vmatprep.subr.mxu0 %v643
        %683 = vmatpush1.msra.mxu0 %v642
        %684 = vmatprep.subr.mxu0 %v651
        %685 = vmatpush1.msra.mxu0 %v650
        %686 = vmatprep.subr.mxu0 %v659
        %687 = vmatpush1.msra.mxu0 %v658
        %688 = vmatprep.subr.mxu0 0.0
        %689 = vmatpush1.msra.mxu0 0.0
        %690 = vmatprep.subr.mxu0 0.0
        %691 = vmatpush1.msra.mxu0 0.0
        %692 = vmatprep.subr.mxu0 0.0
        %693 = vmatpush1.msra.mxu0 0.0
        %694 = vmatprep.subr.mxu0 0.0
        %695 = vmatpush1.msra.mxu0 0.0
        %696 = vmatprep.subr.mxu0 0.0
        %697 = vmatpush1.msra.mxu0 0.0
        %698 = vmatprep.subr.mxu0 0.0
        %699 = vmatpush1.msra.mxu0 0.0
        %700 = vmatprep.subr.mxu0 0.0
        %701 = vmatpush1.msra.mxu0 0.0
        %702 = vmatprep.subr.mxu0 0.0
        %703 = vmatpush1.msra.mxu0 0.0
        %704 = vmatprep.subr.mxu0 0.0
        %705 = vmatpush1.msra.mxu0 0.0
        %706 = vmatprep.subr.mxu0 0.0
        %707 = vmatpush1.msra.mxu0 0.0
        %708 = vmatprep.subr.mxu0 0.0
        %709 = vmatpush1.msra.mxu0 0.0
        %710 = vmatprep.subr.mxu0 0.0
        %711 = vmatpush1.msra.mxu0 0.0
        %712 = vmatprep.subr.mxu0 0.0
        %713 = vmatpush1.msra.mxu0 0.0
        %714 = vmatprep.subr.mxu0 0.0
        %715 = vmatpush1.msra.mxu0 0.0
        %716 = vmatprep.subr.mxu0 0.0
        %717 = vmatpush1.msra.mxu0 0.0
        %718 = vmatprep.subr.mxu0 0.0
        %719 = vmatpush1.msra.mxu0 0.0
        %720 = vmatprep.subr.mxu0 0.0
        %721 = vmatpush1.msra.mxu0 0.0
        %722 = vmatprep.subr.mxu0 0.0
        %723 = vmatpush1.msra.mxu0 0.0
        %724 = vmatprep.subr.mxu0 0.0
        %725 = vmatpush1.msra.mxu0 0.0
        %726 = vmatprep.subr.mxu0 0.0
        %727 = vmatpush1.msra.mxu0 0.0
        %728 = vmatprep.subr.mxu0 0.0
        %729 = vmatpush1.msra.mxu0 0.0
        %730 = vmatprep.subr.mxu0 0.0
        %731 = vmatpush1.msra.mxu0 0.0
        %732 = vmatprep.subr.mxu0 0.0
        %733 = vmatpush1.msra.mxu0 0.0
        %734 = vmatprep.mubr.f32.mxu0 0.0
        %735 = vmatmul.mubr.f32.gmra.mrb[0].mxu0 %v668
        %v736 = vpop.f32.mrb[0].mxu0
        %v737 = vadd.f32 %v665, %v736
        %v738 = vpop.f32.mrb[0].mxu0
        %v739 = vadd.f32 %v665, %v738
        %740 = vdwg.mxu0
        %v741 = vadd.f32 %v737, %v348
        %v742 = vadd.f32 %v739, %v349
        %v743 = vmax.f32 %v741, 0.0
        %v744 = vmax.f32 %v742, 0.0
        %v747 = vcombine.low %v743, %v744
        %749 = vst [vmem:[%s294] sm:$0xff] %v747
        %s750 = sand.u32 %s184, 1
        %s751 = scalar_lea.sflag [#allocation4], %s750
        %s752 = sand.u32 %s184, 1
        %s753 = smul.addr %s752, 8
        %s754 = scalar_lea.vmem [#allocation5], %s753
        // Predicated region
        $region53: #{tpu_custom_call.1} parent=47 // pred_check
          %p755 = pneg %p194
        $region54: #{tpu_custom_call.1} parent=47 // pred_check_branch
          %757 = sbr.rel (%p755) target = $region56
        $region55: #{tpu_custom_call.1} parent=47 // pred_region
          %s759 = ssub.s32 128, 128
          %760 = vsyncadd %s751, %s759
          %s761 = smul.addr %s24, 2
          %s762 = smul.addr %s761, 64
          %s763 = scalar_lea.hbm %s7, %s762
          %s765 = sshll.u32 %s754, 4
          %s766 = int_to_ptr.vmem [resolvable:$true] %s765
          %768 = dma.vmem_to_hbm [thread:$0]  %s766, 128, %s763, %s751
        $region56: #{tpu_custom_call.1} parent=47 // pred_fallthru
          _
      $region48: #{tpu_custom_call.1} parent=5 // pred_fallthru
        _
      %p769 = scmp.le.s32.totalorder 2, %s19
      // Predicated region
      $region57: #{tpu_custom_call.1} parent=5 // pred_check
        %p770 = pneg %p769
      $region58: #{tpu_custom_call.1} parent=5 // pred_check_branch
        %772 = sbr.rel (%p770) target = $region60
      $region59: #{tpu_custom_call.1} parent=5 // pred_region
        %s773 = ssub.s32 %s19, 2
        // Predicated region
        $region61: #{tpu_custom_call.1} parent=59 // pred_check
          %p774 = pneg %p200
        $region62: #{tpu_custom_call.1} parent=59 // pred_check_branch
          %776 = sbr.rel (%p774) target = $region64
        $region63: #{tpu_custom_call.1} parent=59 // pred_region
          %s777 = sand.u32 %s185, 1
          %s778 = scalar_lea.sflag [#allocation4], %s777
          %s779 = sand.u32 %s185, 1
          %s780 = smul.addr %s779, 8
          %s781 = scalar_lea.vmem [#allocation5], %s780
          %782 = dma.done %s778, 128
        $region64: #{tpu_custom_call.1} parent=59 // pred_fallthru
          _
      $region60: #{tpu_custom_call.1} parent=5 // pred_fallthru
        _
    $region6: #{tpu_custom_call.1} parent=1 // loop_footer
      %s23 = sadd.s32 1, %s19
    $region7: #{tpu_custom_call.1} parent=1 // loop_footer_branch
      %18 = sbr.rel target = $region3
    $region8: #{tpu_custom_call.1} parent=1 // loop_exit
      _
    %783 = vsyncpa [#allocation3], 1
    %s784 = scalar_lea.sflag [#allocation3], 1
    %785 = vsyncpa %s784, 1
    %786 = vsyncpa [#allocation4], 1
    %s787 = scalar_lea.sflag [#allocation4], 1
    %788 = vsyncpa %s787, 1

</llo_original>
